<compile_context>
chip_gen: v7x
topology: tpu7x:2x2x1
jax: 0.10.0
libtpu: 0.0.40
codegen_flags: <defaults>
</compile_context>

<pallas_src>
import math

import jax
import jax.numpy as jnp
from jax.experimental import pallas as pl
from jax.experimental.pallas import tpu as pltpu

IN_FEATURES = 20
HIDDEN = 20
OUT_FEATURES = 40

MAX_BATCH_TILE = 4096   # 8 MiB double-buffered VMEM (see accounting above)
MIN_GRID_STEPS = 2      # keep >= 2 steps so v7x's 2 TensorCores both get work


def _round_up(x, m):
    return ((x + m - 1) // m) * m


def _fused_linear_kernel(x_ref, w_ref, b_ref, o_ref):
    # x: (tile_b, 20), w: (20, 40), b: (1, 40), o: (tile_b, 40)
    out = jnp.dot(x_ref[...], w_ref[...], preferred_element_type=jnp.float32)
    o_ref[...] = (out + b_ref[...]).astype(o_ref.dtype)


def fuse_params(w1_t, b1, w2_t):
    """Fold the two linear layers into one affine map (exact algebraically).

    Call ONCE when weights are static across forward calls so each call is a
    single pallas_call with no extra tiny XLA matmuls.
    """
    w_fused = jnp.dot(w1_t, w2_t)   # (20, 40)
    b_fused = jnp.dot(b1, w2_t)     # (1, 40)
    return w_fused, b_fused


def mlp_forward_fused(data, w_fused, b_fused):
    """Forward with pre-fused weights.  data: (B, 20) f32 -> (B, 40) f32."""
    B = data.shape[0]
    # Largest 8-aligned tile that (a) stays within the VMEM budget and
    # (b) yields at least MIN_GRID_STEPS grid steps for mid/large B.
    tile_b = min(MAX_BATCH_TILE, _round_up(pl.cdiv(B, MIN_GRID_STEPS), 8))
    grid = (pl.cdiv(B, tile_b),)   # ragged last block — no pad / slice needed

    return pl.pallas_call(
        _fused_linear_kernel,
        out_shape=jax.ShapeDtypeStruct((B, OUT_FEATURES), data.dtype),
        grid=grid,
        in_specs=[
            pl.BlockSpec((tile_b, IN_FEATURES), lambda i: (i, 0)),
            pl.BlockSpec((IN_FEATURES, OUT_FEATURES), lambda i: (0, 0)),
            pl.BlockSpec((1, OUT_FEATURES), lambda i: (0, 0)),
        ],
        out_specs=pl.BlockSpec((tile_b, OUT_FEATURES), lambda i: (i, 0)),
        compiler_params=pltpu.CompilerParams(
            dimension_semantics=("parallel",),
        ),
    )(data, w_fused, b_fused)


def mlp_forward(data, w1_t, b1, w2_t):
    """Convenience wrapper taking unfused params (fuses per call)."""
    w_fused, b_fused = fuse_params(w1_t, b1, w2_t)
    return mlp_forward_fused(data, w_fused, b_fused)


def init_params(key):
    """Deterministic init mirroring torch.nn.Linear's default U(-1/sqrt(fan_in), +)."""
    k1, k2, k3 = jax.random.split(key, 3)
    bound1 = 1.0 / math.sqrt(IN_FEATURES)
    # PyTorch stores (out, in); we keep the transposed (in, out) layout.
    w1_t = jax.random.uniform(k1, (IN_FEATURES, HIDDEN), jnp.float32, -bound1, bound1)
    b1 = jax.random.uniform(k2, (1, HIDDEN), jnp.float32, -bound1, bound1)
    bound2 = 1.0 / math.sqrt(HIDDEN)
    w2_t = jax.random.uniform(k3, (HIDDEN, OUT_FEATURES), jnp.float32, -bound2, bound2)
    return w1_t, b1, w2_t


if __name__ == "__main__":
    key = jax.random.PRNGKey(0)
    pkey, xk1, xk2, xk3 = jax.random.split(key, 4)
    w1_t, b1, w2_t = init_params(pkey)

    # Fuse once (weights are static across calls), jit the per-call forward.
    w_fused, b_fused = fuse_params(w1_t, b1, w2_t)
    forward = jax.jit(mlp_forward_fused)

    def reference(x):
        return (x @ w1_t + b1) @ w2_t   # unfused two-matmul reference

    # Batches: 8 (aligned), 50 (multi-step grid + ragged last block),
    # 2 (block larger than the array along the batch axis).
    for batch, xkey in ((8, xk1), (50, xk2), (2, xk3)):
        data = jax.random.normal(xkey, (batch, IN_FEATURES), jnp.float32)
        out = jax.block_until_ready(forward(data, w_fused, b_fused))
        ref = reference(data)
        assert out.shape == (batch, OUT_FEATURES), out.shape
        # Tolerance-based check: algebraic fusion changes f32 associativity
        # vs the two-matmul path, so exact bitwise equality is not expected.
        assert jnp.allclose(out, ref, atol=1e-5, rtol=1e-5), f"mismatch (B={batch})"

    print("KERNEL_OK")
</pallas_src>

<mosaic_0001>
module attributes {stable_mosaic.version = 11 : i64} {
  func.func @_fused_linear_kernel(%arg0: i32, %arg1: memref<8x20xf32, #tpu.memory_space<vmem>>, %arg2: memref<20x40xf32, #tpu.memory_space<vmem>>, %arg3: memref<1x40xf32, #tpu.memory_space<vmem>>, %arg4: memref<8x40xf32, #tpu.memory_space<vmem>>) attributes {dimension_semantics = [#tpu.dimension_semantics<parallel>], iteration_bounds = array<i64: 1>, scalar_prefetch = 0 : i64, scratch_operands = 0 : i64, tpu.core_type = #tpu.core_type<tc>, window_params = [{transform_indices = @transform_0, window_bounds = array<i64: 8, 20>}, {pipeline_mode = #tpu.pipeline_mode<synchronous>, transform_indices = @transform_1, window_bounds = array<i64: 20, 40>}, {pipeline_mode = #tpu.pipeline_mode<synchronous>, transform_indices = @transform_2, window_bounds = array<i64: 1, 40>}, {transform_indices = @transform_3, window_bounds = array<i64: 8, 40>}]} {
    %c0 = arith.constant 0 : index
    %c0_0 = arith.constant 0 : index
    %0 = vector.load %arg1[%c0, %c0_0] : memref<8x20xf32, #tpu.memory_space<vmem>>, vector<8x20xf32>
    %c0_1 = arith.constant 0 : index
    %c0_2 = arith.constant 0 : index
    %1 = vector.load %arg2[%c0_1, %c0_2] : memref<20x40xf32, #tpu.memory_space<vmem>>, vector<20x40xf32>
    %cst = arith.constant dense<0.000000e+00> : vector<8x40xf32>
    %2 = tpu.matmul %0, %1, %cst {dimension_numbers = #tpu.dot_dimension_numbers<[1], [0], [0], [1], [0, 0, 1, 1], [], []>} : vector<8x20xf32>, vector<20x40xf32>, vector<8x40xf32> -> vector<8x40xf32>
    %c0_3 = arith.constant 0 : index
    %c0_4 = arith.constant 0 : index
    %3 = vector.load %arg3[%c0_3, %c0_4] : memref<1x40xf32, #tpu.memory_space<vmem>>, vector<1x40xf32>
    %4 = vector.broadcast %3 : vector<1x40xf32> to vector<8x40xf32>
    %5 = arith.addf %2, %4 : vector<8x40xf32>
    %c0_5 = arith.constant 0 : index
    %c0_6 = arith.constant 0 : index
    %6 = vector.load %arg4[%c0_5, %c0_6] : memref<8x40xf32, #tpu.memory_space<vmem>>, vector<8x40xf32>
    tpu.vector_store %arg4[%c0_5, %c0_6], %5 {strides = array<i32>} : memref<8x40xf32, #tpu.memory_space<vmem>>, vector<8x40xf32>,
    return
  }
  func.func @transform_0(%arg0: i32) -> (i32, i32) {
    %c0_i32 = arith.constant 0 : i32
    %c0_i32_0 = arith.constant 0 : i32
    return %arg0, %c0_i32 : i32, i32
  }
  func.func @transform_1(%arg0: i32) -> (i32, i32) {
    %c0_i32 = arith.constant 0 : i32
    %c0_i32_0 = arith.constant 0 : i32
    %c0_i32_1 = arith.constant 0 : i32
    return %c0_i32, %c0_i32_0 : i32, i32
  }
  func.func @transform_2(%arg0: i32) -> (i32, i32) {
    %c0_i32 = arith.constant 0 : i32
    %c0_i32_0 = arith.constant 0 : i32
    %c0_i32_1 = arith.constant 0 : i32
    return %c0_i32, %c0_i32_0 : i32, i32
  }
  func.func @transform_3(%arg0: i32) -> (i32, i32) {
    %c0_i32 = arith.constant 0 : i32
    %c0_i32_0 = arith.constant 0 : i32
    return %arg0, %c0_i32 : i32, i32
  }
}

</mosaic_0001>

<llo_original>
// kernel: mlp_forward_fused.1
$region0: #{mlp_forward_fused.1}
  #allocation0 [shape = 'u32[]', space=smem, size = 0x4, offset = 0x4, fixed_abs, tag = 'smem constant byte address 0x4 - core index']
  #allocation1 [shape = 'u32[144,128]{1,0:T(1,128)}', space=vmem, size = 0x12000, scoped, tag = 'internal scratch']
  %s0 = inlined_call_operand.hbm [shape: f32[8,20], index: 0, kind: input, shape index: {}]
  %s1 = inlined_call_operand.hbm [shape: f32[20,40], index: 1, kind: input, shape index: {}]
  %s2 = inlined_call_operand.vmem [shape: f32[1,40], index: 2, kind: input, shape index: {}]
  %s3 = inlined_call_operand.hbm [shape: f32[8,40], index: 3, kind: output, shape index: {}]
  %s4 = sld [smem:[#allocation0]]
  $region30: #{mlp_forward_fused.1} parent=0
    _
  %s6 = ssub.s32 1, %s4
  %s7 = scalar_select 0, %s6, %s4
  $region1: #{mlp_forward_fused.1} parent=0
    #allocation2 [shape = 'u8[4096]{0}', space=vmem, size = 0x1000, scoped, tag = 'input window, operand 0, single buffered']
    #allocation3 [shape = 's32[1]{0}', space=sflag, size = 0x4, scoped, tag = 'scoped memory for mlp_forward_fused.1']
    #allocation4 [shape = 's32[1]{0}', space=sflag, size = 0x4, scoped, tag = 'scoped memory for mlp_forward_fused.1']
    #allocation5 [shape = 'u8[12288]{0}', space=vmem, size = 0x3000, scoped, tag = 'input window, operand 1, single buffered']
    #allocation6 [shape = 's32[1]{0}', space=sflag, size = 0x4, scoped, tag = 'scoped memory for mlp_forward_fused.1']
    #allocation7 [shape = 'u8[4096]{0}', space=vmem, size = 0x1000, scoped, tag = 'output window, operand 0, single buffered']
    %8 = vsyncpa [#allocation3], 0
    %9 = vsyncpa [#allocation6], 0
    %10 = vsyncpa [#allocation4], 0
    // Predicated region
    $region2: #{mlp_forward_fused.1} parent=1 // pred_check
      _
    $region3: #{mlp_forward_fused.1} parent=1 // pred_check_branch
      %12 = sbr.rel (0) target = $region5
    $region4: #{mlp_forward_fused.1} parent=1 // pred_region
      %s14 = ssub.s32 128, 128
      %15 = vsyncadd [#allocation3], %s14
      %s17 = sshll.u32 [#allocation2], 4
      %s18 = int_to_ptr.vmem [resolvable:$true] %s17
      %20 = dma.hbm_to_vmem [thread:$0]  %s0, 128, %s18, [#allocation3]
    $region5: #{mlp_forward_fused.1} parent=1 // pred_fallthru
      _
    // Predicated region
    $region6: #{mlp_forward_fused.1} parent=1 // pred_check
      _
    $region7: #{mlp_forward_fused.1} parent=1 // pred_check_branch
      %22 = sbr.rel (0) target = $region9
    $region8: #{mlp_forward_fused.1} parent=1 // pred_region
      %s24 = ssub.s32 384, 384
      %25 = vsyncadd [#allocation6], %s24
      %s26 = sshll.u32 [#allocation5], 4
      %s27 = int_to_ptr.vmem [resolvable:$true] %s26
      %32 = dma.hbm_to_vmem [thread:$0]  %s1, 384, %s27, [#allocation6], 128, 128, 8
    $region9: #{mlp_forward_fused.1} parent=1 // pred_fallthru
      _
    // Predicated region
    $region10: #{mlp_forward_fused.1} parent=1 // pred_check
      _
    $region11: #{mlp_forward_fused.1} parent=1 // pred_check_branch
      %34 = sbr.rel (0) target = $region13
    $region12: #{mlp_forward_fused.1} parent=1 // pred_region
      _
    $region13: #{mlp_forward_fused.1} parent=1 // pred_fallthru
      _
    // Predicated region
    $region14: #{mlp_forward_fused.1} parent=1 // pred_check
      _
    $region15: #{mlp_forward_fused.1} parent=1 // pred_check_branch
      %36 = sbr.rel (0) target = $region17
    $region16: #{mlp_forward_fused.1} parent=1 // pred_region
      %37 = dma.done [#allocation3], 128
    $region17: #{mlp_forward_fused.1} parent=1 // pred_fallthru
      _
    // Predicated region
    $region18: #{mlp_forward_fused.1} parent=1 // pred_check
      _
    $region19: #{mlp_forward_fused.1} parent=1 // pred_check_branch
      %39 = sbr.rel (0) target = $region21
    $region20: #{mlp_forward_fused.1} parent=1 // pred_region
      %40 = dma.done [#allocation6], 384
    $region21: #{mlp_forward_fused.1} parent=1 // pred_fallthru
      _
    %v41 = vld [vmem:[#allocation2] sm:$0xff]
    %v42 = vld [vmem:[#allocation5] sm:$0xff]
    %v43 = vld [vmem:[#allocation5 + $0x8] sm:$0xff]
    %v44 = vld [vmem:[#allocation5 + $0x10] sm:$0xf]
    %v45 = vld [vmem:[%s2] sm:$0x1]
    %v47 = vlaneseq
    %v48 = vshrl.u32 %v47, 7
    %v49 = vsub.s32 0, %v48
    %v50 = vrot.slane %v45, %v49
    %vm52 = vcmask 162816
    %v54 = vsel %vm52, %v41, 0
    %vm56 = vcmask 1043456
    %v58 = vsel %vm56, %v44, 0
    %60 = vmatprep.subr.mxu0 0.0
    %61 = vmatpush1.msra.mxu0 %v42
    %62 = vmatprep.subr.mxu0 0.0
    %63 = vmatpush1.msra.mxu0 %v43
    %64 = vmatprep.subr.mxu0 0.0
    %65 = vmatpush1.msra.mxu0 %v58
    %66 = vmatprep.subr.mxu0 0.0
    %67 = vmatpush1.msra.mxu0 0.0
    %68 = vmatprep.subr.mxu0 0.0
    %69 = vmatpush1.msra.mxu0 0.0
    %70 = vmatprep.subr.mxu0 0.0
    %71 = vmatpush1.msra.mxu0 0.0
    %72 = vmatprep.subr.mxu0 0.0
    %73 = vmatpush1.msra.mxu0 0.0
    %74 = vmatprep.subr.mxu0 0.0
    %75 = vmatpush1.msra.mxu0 0.0
    %76 = vmatprep.subr.mxu0 0.0
    %77 = vmatpush1.msra.mxu0 0.0
    %78 = vmatprep.subr.mxu0 0.0
    %79 = vmatpush1.msra.mxu0 0.0
    %80 = vmatprep.subr.mxu0 0.0
    %81 = vmatpush1.msra.mxu0 0.0
    %82 = vmatprep.subr.mxu0 0.0
    %83 = vmatpush1.msra.mxu0 0.0
    %84 = vmatprep.subr.mxu0 0.0
    %85 = vmatpush1.msra.mxu0 0.0
    %86 = vmatprep.subr.mxu0 0.0
    %87 = vmatpush1.msra.mxu0 0.0
    %88 = vmatprep.subr.mxu0 0.0
    %89 = vmatpush1.msra.mxu0 0.0
    %90 = vmatprep.subr.mxu0 0.0
    %91 = vmatpush1.msra.mxu0 0.0
    %92 = vmatprep.subr.mxu0 0.0
    %93 = vmatpush1.msra.mxu0 0.0
    %94 = vmatprep.subr.mxu0 0.0
    %95 = vmatpush1.msra.mxu0 0.0
    %96 = vmatprep.subr.mxu0 0.0
    %97 = vmatpush1.msra.mxu0 0.0
    %98 = vmatprep.subr.mxu0 0.0
    %99 = vmatpush1.msra.mxu0 0.0
    %100 = vmatprep.subr.mxu0 0.0
    %101 = vmatpush1.msra.mxu0 0.0
    %102 = vmatprep.subr.mxu0 0.0
    %103 = vmatpush1.msra.mxu0 0.0
    %104 = vmatprep.subr.mxu0 0.0
    %105 = vmatpush1.msra.mxu0 0.0
    %106 = vmatprep.subr.mxu0 0.0
    %107 = vmatpush1.msra.mxu0 0.0
    %108 = vmatprep.subr.mxu0 0.0
    %109 = vmatpush1.msra.mxu0 0.0
    %110 = vmatprep.subr.mxu0 0.0
    %111 = vmatpush1.msra.mxu0 0.0
    %112 = vmatprep.subr.mxu0 0.0
    %113 = vmatpush1.msra.mxu0 0.0
    %114 = vmatprep.subr.mxu0 0.0
    %115 = vmatpush1.msra.mxu0 0.0
    %116 = vmatprep.subr.mxu0 0.0
    %117 = vmatpush1.msra.mxu0 0.0
    %118 = vmatprep.subr.mxu0 0.0
    %119 = vmatpush1.msra.mxu0 0.0
    %120 = vmatprep.subr.mxu0 0.0
    %121 = vmatpush1.msra.mxu0 0.0
    %122 = vmatprep.subr.mxu0 0.0
    %123 = vmatpush1.msra.mxu0 0.0
    %124 = vmatprep.mubr.f32.mxu0 0.0
    %125 = vmatmul.mubr.f32.gmra.mrb[0].mxu0 %v54
    %v126 = vpop.f32.mrb[0].mxu0
    %v127 = vadd.f32 %v50, %v126
    %v128 = vpop.f32.mrb[0].mxu0
    %129 = vdwg.mxu0
    %vm130 = vcmask 326656
    %131 = vst.msk [vmem:[#allocation7] sm:$0xff] %vm130, %v127
    // Predicated region
    $region22: #{mlp_forward_fused.1} parent=1 // pred_check
      _
    $region23: #{mlp_forward_fused.1} parent=1 // pred_check_branch
      %133 = sbr.rel (0) target = $region25
    $region24: #{mlp_forward_fused.1} parent=1 // pred_region
      %s135 = ssub.s32 128, 128
      %136 = vsyncadd [#allocation4], %s135
      %s138 = sshll.u32 [#allocation7], 4
      %s139 = int_to_ptr.vmem [resolvable:$true] %s138
      %141 = dma.vmem_to_hbm [thread:$0]  %s139, 128, %s3, [#allocation4]
    $region25: #{mlp_forward_fused.1} parent=1 // pred_fallthru
      _
    // Predicated region
    $region26: #{mlp_forward_fused.1} parent=1 // pred_check
      _
    $region27: #{mlp_forward_fused.1} parent=1 // pred_check_branch
      %143 = sbr.rel (0) target = $region29
    $region28: #{mlp_forward_fused.1} parent=1 // pred_region
      %144 = dma.done [#allocation4], 128
    $region29: #{mlp_forward_fused.1} parent=1 // pred_fallthru
      _
    %145 = vsyncpa [#allocation3], 1
    %146 = vsyncpa [#allocation6], 1
    %147 = vsyncpa [#allocation4], 1

</llo_original>
